<compile_context>
chip_gen: v7x
topology: tpu7x:2x2x1
jax: 0.10.0
libtpu: 0.0.40
codegen_flags: <defaults>
</compile_context>

<pallas_src>
import jax
import jax.numpy as jnp
from jax.experimental import pallas as pl
from jax.experimental.pallas import tpu as pltpu


def _round_up(x, m):
    return ((x + m - 1) // m) * m


def _chapter_head_kernel(lang_ref, vis_ref, wl_ref, wbd_ref, wh_ref, b_ref,
                         out_ref, flat_ref):
    SH = wbd_ref.shape[1]          # S * H  (vision slab width, lane-dense)
    cdt = wbd_ref.dtype            # MXU operand dtype (f32 or compute_dtype)

    # Vision branch: one block-diagonal matmul covers all S segments.
    # Zero off-diagonal FLOPs are free in a memory-bound kernel; the result is
    # written with a single unmasked 256-lane store into the fused slab.
    vis_h = jnp.maximum(
        jnp.dot(vis_ref[...].astype(cdt), wbd_ref[...],
                preferred_element_type=jnp.float32),
        0.0)                                                # [bt, S*H] f32
    flat_ref[:, :SH] = vis_h.astype(flat_ref.dtype)

    # Language branch occupies the last H-wide slot (matches the reference
    # torch.cat([vision_out, lang_out], dim=1) ordering).
    lang_h = jnp.maximum(
        jnp.dot(lang_ref[...].astype(cdt), wl_ref[...],
                preferred_element_type=jnp.float32),
        0.0)                                                # [bt, H] f32
    flat_ref[:, SH:] = lang_h.astype(flat_ref.dtype)

    # Single fused head matmul with K = (S+1)*H; bias added in f32.
    out = jnp.dot(flat_ref[...], wh_ref[...],
                  preferred_element_type=jnp.float32) + b_ref[...]
    out_ref[...] = out.astype(out_ref.dtype)


def chapter_head_mlp(lang_emb, vision_emb, w_lang, w_vision, w_head, b_head,
                     *, block_b=None, compute_dtype=None):
    """Pallas implementation of ChapterHead.forward (head_type='mlp').

    lang_emb   : [B, L]
    vision_emb : [B, S, V]
    w_lang     : [L, H]            (lang_proj_head.weight.T)
    w_vision   : [V, H]            (vision_proj_head.weight.T)
    w_head     : [(S+1)*H, O]      (head.weight.T)
    b_head     : [O]
    returns    : [B, O]
    """
    B, L = lang_emb.shape
    _, S, V = vision_emb.shape
    H = w_lang.shape[1]
    O = w_head.shape[1]
    out_dtype = lang_emb.dtype

    # --- weight-side prep (one tiny pass over weights; activations are never
    #     touched / re-materialized in the wrapper) --------------------------
    w_dtype = compute_dtype if compute_dtype is not None else w_lang.dtype
    # Block-diagonal vision weight [S*V, S*H] with w_vision on the diagonal.
    w_bd = jnp.kron(jnp.eye(S, dtype=w_vision.dtype), w_vision).astype(w_dtype)
    w_lang_c = w_lang.astype(w_dtype)
    # Lane-dense output: pad O up to a multiple of 128; slice back outside.
    O_pad = _round_up(O, 128)
    w_head_p = jnp.pad(w_head, ((0, 0), (0, O_pad - O))).astype(w_dtype)
    b_p = jnp.pad(b_head, (0, O_pad - O)).reshape(1, O_pad).astype(jnp.float32)

    # Free, contiguous view: last dim S*V is a multiple of 128 -> dense DMA
    # rows and no lane padding of the vision tile in VMEM.
    vis2d = vision_emb.reshape(B, S * V)

    # --- batch-tile selection ------------------------------------------------
    if block_b is None:
        if B <= 8:
            block_b = B                       # single step for tiny batches
        else:
            # >= 2 grid steps so both v7x TensorCores get work; cap at 1024
            # rows (per-step working set stays a few MiB even in f32).
            block_b = min(1024, _round_up(pl.cdiv(B, 2), 8))
    block_b = min(block_b, B)
    grid = (pl.cdiv(B, block_b),)

    # --- VMEM budget: double-buffered I/O tiles + resident weights + scratch -
    act_i = jnp.dtype(out_dtype).itemsize
    w_i = jnp.dtype(w_dtype).itemsize
    lane = lambda n: _round_up(n, 128)
    sub = lambda n: _round_up(n, 8)
    bb = sub(block_b)
    est = (2 * bb * (lane(L) + lane(S * V) + lane(O_pad)) * act_i
           + bb * lane((S + 1) * H) * w_i
           + 2 * (sub(L) * lane(H) + sub(S * V) * lane(S * H)
                  + sub((S + 1) * H) * lane(O_pad) + 8 * lane(O_pad)) * w_i)
    vmem_limit = None
    if est > 12 * (1 << 20):                  # only raise past v5e's default
        vmem_limit = int(min(est + (4 << 20), 60 * (1 << 20)))

    out_p = pl.pallas_call(
        _chapter_head_kernel,
        out_shape=jax.ShapeDtypeStruct((B, O_pad), out_dtype),
        grid_spec=pltpu.PrefetchScalarGridSpec(
            num_scalar_prefetch=0,
            grid=grid,
            in_specs=[
                pl.BlockSpec((block_b, L), lambda i: (i, 0)),          # lang
                pl.BlockSpec((block_b, S * V), lambda i: (i, 0)),      # vision
                pl.BlockSpec((L, H), lambda i: (0, 0)),                # w_lang
                pl.BlockSpec((S * V, S * H), lambda i: (0, 0)),        # w block-diag
                pl.BlockSpec(((S + 1) * H, O_pad), lambda i: (0, 0)),  # w_head
                pl.BlockSpec((1, O_pad), lambda i: (0, 0)),            # bias
            ],
            out_specs=pl.BlockSpec((block_b, O_pad), lambda i: (i, 0)),
            scratch_shapes=[
                # Fused "concat + flatten" activation slab (head-matmul LHS).
                pltpu.VMEM((block_b, (S + 1) * H), w_dtype),
            ],
        ),
        compiler_params=pltpu.CompilerParams(
            # Batch tiles are independent -> shard across cores / megacore.
            dimension_semantics=("parallel",),
            vmem_limit_bytes=vmem_limit),
    )(lang_emb, vis2d, w_lang_c, w_bd, w_head_p, b_p)

    return out_p[:, :O] if O_pad != O else out_p


def chapter_head_ref(lang_emb, vision_emb, w_lang, w_vision, w_head, b_head):
    """Pure-JAX reference matching the PyTorch forward exactly."""
    B = lang_emb.shape[0]
    lang_out = jax.nn.relu(lang_emb @ w_lang)[:, None, :]       # [B, 1, H]
    vis_out = jax.nn.relu(vision_emb @ w_vision)                # [B, S, H]
    fusion = jnp.concatenate([vis_out, lang_out], axis=1)       # [B, S+1, H]
    flat = fusion.reshape(B, -1)
    return flat @ w_head + b_head


if __name__ == "__main__":
    # Module hyper-params (small, consistent with ChapterHead.__init__).
    B = 2
    lang_emb_size = 32
    vision_emb_size = 64
    segment_size = 8
    hidden_size = 32
    output_size = 16

    key = jax.random.PRNGKey(0)
    k = jax.random.split(key, 6)

    # Deterministic synthetic inputs / parameters.
    lang_emb = jax.random.normal(k[0], (B, lang_emb_size), jnp.float32)
    vision_emb = jax.random.normal(
        k[1], (B, segment_size, vision_emb_size), jnp.float32)

    # Parameters stored as [in, out] (transpose of PyTorch's [out, in]).
    w_lang = jax.random.normal(
        k[2], (lang_emb_size, hidden_size), jnp.float32) * 0.05
    w_vision = jax.random.normal(
        k[3], (vision_emb_size, hidden_size), jnp.float32) * 0.05
    w_head = jax.random.normal(
        k[4], ((segment_size + 1) * hidden_size, output_size),
        jnp.float32) * 0.05
    b_head = jax.random.normal(k[5], (output_size,), jnp.float32) * 0.05

    out = chapter_head_mlp(lang_emb, vision_emb,
                           w_lang, w_vision, w_head, b_head)
    out = jax.block_until_ready(out)

    ref = chapter_head_ref(lang_emb, vision_emb,
                           w_lang, w_vision, w_head, b_head)
    assert out.shape == (B, output_size)
    assert jnp.allclose(out, ref, atol=1e-4, rtol=1e-4), (
        "Pallas output mismatch vs reference")

    print("KERNEL_OK")
</pallas_src>

<mosaic_0001>
module attributes {stable_mosaic.version = 11 : i64} {
  func.func @_chapter_head_kernel(%arg0: i32, %arg1: memref<2x32xf32, #tpu.memory_space<vmem>>, %arg2: memref<2x512xf32, #tpu.memory_space<vmem>>, %arg3: memref<32x32xf32, #tpu.memory_space<vmem>>, %arg4: memref<512x256xf32, #tpu.memory_space<vmem>>, %arg5: memref<288x128xf32, #tpu.memory_space<vmem>>, %arg6: memref<1x128xf32, #tpu.memory_space<vmem>>, %arg7: memref<2x128xf32, #tpu.memory_space<vmem>>, %arg8: memref<2x288xf32, #tpu.memory_space<vmem>>) attributes {dimension_semantics = [#tpu.dimension_semantics<parallel>], iteration_bounds = array<i64: 1>, scalar_prefetch = 0 : i64, scratch_operands = 1 : i64, tpu.core_type = #tpu.core_type<tc>, window_params = [{transform_indices = @transform_0, window_bounds = array<i64: 2, 32>}, {transform_indices = @transform_1, window_bounds = array<i64: 2, 512>}, {pipeline_mode = #tpu.pipeline_mode<synchronous>, transform_indices = @transform_2, window_bounds = array<i64: 32, 32>}, {pipeline_mode = #tpu.pipeline_mode<synchronous>, transform_indices = @transform_3, window_bounds = array<i64: 512, 256>}, {pipeline_mode = #tpu.pipeline_mode<synchronous>, transform_indices = @transform_4, window_bounds = array<i64: 288, 128>}, {pipeline_mode = #tpu.pipeline_mode<synchronous>, transform_indices = @transform_5, window_bounds = array<i64: 1, 128>}, {transform_indices = @transform_6, window_bounds = array<i64: 2, 128>}]} {
    %c0 = arith.constant 0 : index
    %c0_0 = arith.constant 0 : index
    %0 = vector.load %arg2[%c0, %c0_0] : memref<2x512xf32, #tpu.memory_space<vmem>>, vector<2x512xf32>
    %c0_1 = arith.constant 0 : index
    %c0_2 = arith.constant 0 : index
    %1 = vector.load %arg4[%c0_1, %c0_2] : memref<512x256xf32, #tpu.memory_space<vmem>>, vector<512x256xf32>
    %cst = arith.constant dense<0.000000e+00> : vector<2x256xf32>
    %2 = tpu.matmul %0, %1, %cst {dimension_numbers = #tpu.dot_dimension_numbers<[1], [0], [0], [1], [0, 0, 1, 1], [], []>} : vector<2x512xf32>, vector<512x256xf32>, vector<2x256xf32> -> vector<2x256xf32>
    %cst_3 = arith.constant 0.000000e+00 : f32
    %3 = vector.broadcast %cst_3 : f32 to vector<2x256xf32>
    %4 = arith.maximumf %2, %3 : vector<2x256xf32>
    %c0_4 = arith.constant 0 : index
    %c0_5 = arith.constant 0 : index
    %5 = vector.load %arg8[%c0_4, %c0_5] : memref<2x288xf32, #tpu.memory_space<vmem>>, vector<2x256xf32>
    tpu.vector_store %arg8[%c0_4, %c0_5], %4 {strides = array<i32>} : memref<2x288xf32, #tpu.memory_space<vmem>>, vector<2x256xf32>,
    %c0_6 = arith.constant 0 : index
    %c0_7 = arith.constant 0 : index
    %6 = vector.load %arg1[%c0_6, %c0_7] : memref<2x32xf32, #tpu.memory_space<vmem>>, vector<2x32xf32>
    %c0_8 = arith.constant 0 : index
    %c0_9 = arith.constant 0 : index
    %7 = vector.load %arg3[%c0_8, %c0_9] : memref<32x32xf32, #tpu.memory_space<vmem>>, vector<32x32xf32>
    %cst_10 = arith.constant dense<0.000000e+00> : vector<2x32xf32>
    %8 = tpu.matmul %6, %7, %cst_10 {dimension_numbers = #tpu.dot_dimension_numbers<[1], [0], [0], [1], [0, 0, 1, 1], [], []>} : vector<2x32xf32>, vector<32x32xf32>, vector<2x32xf32> -> vector<2x32xf32>
    %cst_11 = arith.constant 0.000000e+00 : f32
    %9 = vector.broadcast %cst_11 : f32 to vector<2x32xf32>
    %10 = arith.maximumf %8, %9 : vector<2x32xf32>
    %c0_12 = arith.constant 0 : index
    %c256 = arith.constant 256 : index
    %11 = vector.load %arg8[%c0_12, %c256] : memref<2x288xf32, #tpu.memory_space<vmem>>, vector<2x32xf32>
    tpu.vector_store %arg8[%c0_12, %c256], %10 {strides = array<i32>} : memref<2x288xf32, #tpu.memory_space<vmem>>, vector<2x32xf32>,
    %c0_13 = arith.constant 0 : index
    %c0_14 = arith.constant 0 : index
    %12 = vector.load %arg8[%c0_13, %c0_14] : memref<2x288xf32, #tpu.memory_space<vmem>>, vector<2x288xf32>
    %c0_15 = arith.constant 0 : index
    %c0_16 = arith.constant 0 : index
    %13 = vector.load %arg5[%c0_15, %c0_16] : memref<288x128xf32, #tpu.memory_space<vmem>>, vector<288x128xf32>
    %cst_17 = arith.constant dense<0.000000e+00> : vector<2x128xf32>
    %14 = tpu.matmul %12, %13, %cst_17 {dimension_numbers = #tpu.dot_dimension_numbers<[1], [0], [0], [1], [0, 0, 1, 1], [], []>} : vector<2x288xf32>, vector<288x128xf32>, vector<2x128xf32> -> vector<2x128xf32>
    %c0_18 = arith.constant 0 : index
    %c0_19 = arith.constant 0 : index
    %15 = vector.load %arg6[%c0_18, %c0_19] : memref<1x128xf32, #tpu.memory_space<vmem>>, vector<1x128xf32>
    %16 = vector.broadcast %15 : vector<1x128xf32> to vector<2x128xf32>
    %17 = arith.addf %14, %16 : vector<2x128xf32>
    %c0_20 = arith.constant 0 : index
    %c0_21 = arith.constant 0 : index
    %18 = vector.load %arg7[%c0_20, %c0_21] : memref<2x128xf32, #tpu.memory_space<vmem>>, vector<2x128xf32>
    tpu.vector_store %arg7[%c0_20, %c0_21], %17 {strides = array<i32>} : memref<2x128xf32, #tpu.memory_space<vmem>>, vector<2x128xf32>,
    return
  }
  func.func @transform_0(%arg0: i32) -> (i32, i32) {
    %c0_i32 = arith.constant 0 : i32
    %c0_i32_0 = arith.constant 0 : i32
    return %arg0, %c0_i32 : i32, i32
  }
  func.func @transform_1(%arg0: i32) -> (i32, i32) {
    %c0_i32 = arith.constant 0 : i32
    %c0_i32_0 = arith.constant 0 : i32
    return %arg0, %c0_i32 : i32, i32
  }
  func.func @transform_2(%arg0: i32) -> (i32, i32) {
    %c0_i32 = arith.constant 0 : i32
    %c0_i32_0 = arith.constant 0 : i32
    %c0_i32_1 = arith.constant 0 : i32
    return %c0_i32, %c0_i32_0 : i32, i32
  }
  func.func @transform_3(%arg0: i32) -> (i32, i32) {
    %c0_i32 = arith.constant 0 : i32
    %c0_i32_0 = arith.constant 0 : i32
    %c0_i32_1 = arith.constant 0 : i32
    return %c0_i32, %c0_i32_0 : i32, i32
  }
  func.func @transform_4(%arg0: i32) -> (i32, i32) {
    %c0_i32 = arith.constant 0 : i32
    %c0_i32_0 = arith.constant 0 : i32
    %c0_i32_1 = arith.constant 0 : i32
    return %c0_i32, %c0_i32_0 : i32, i32
  }
  func.func @transform_5(%arg0: i32) -> (i32, i32) {
    %c0_i32 = arith.constant 0 : i32
    %c0_i32_0 = arith.constant 0 : i32
    %c0_i32_1 = arith.constant 0 : i32
    return %c0_i32, %c0_i32_0 : i32, i32
  }
  func.func @transform_6(%arg0: i32) -> (i32, i32) {
    %c0_i32 = arith.constant 0 : i32
    %c0_i32_0 = arith.constant 0 : i32
    return %arg0, %c0_i32 : i32, i32
  }
}

</mosaic_0001>

<llo_original>
// kernel: tpu_custom_call.1
$region0: #{tpu_custom_call.1}
  #allocation0 [shape = 'u32[]', space=smem, size = 0x4, offset = 0x4, fixed_abs, tag = 'smem constant byte address 0x4 - core index']
  #allocation1 [shape = 'u32[144,128]{1,0:T(1,128)}', space=vmem, size = 0x12000, scoped, tag = 'internal scratch']
  #allocation2 [shape = 'f32[2,288]{1,0:T(2,128)}', space=vmem, size = 0xc00, scoped, tag = 'scratch operand']
  %s0 = inlined_call_operand.hbm [shape: f32[2,32], index: 0, kind: input, shape index: {}]
  %s1 = inlined_call_operand.hbm [shape: f32[2,512], index: 1, kind: input, shape index: {}]
  %s2 = inlined_call_operand.hbm [shape: f32[32,32], index: 2, kind: input, shape index: {}]
  %s3 = inlined_call_operand.hbm [shape: f32[512,256], index: 3, kind: input, shape index: {}]
  %s4 = inlined_call_operand.hbm [shape: f32[288,128], index: 4, kind: input, shape index: {}]
  %s5 = inlined_call_operand.vmem [shape: f32[1,128], index: 5, kind: input, shape index: {}]
  %s6 = inlined_call_operand.hbm [shape: f32[2,128], index: 6, kind: output, shape index: {}]
  %s7 = sld [smem:[#allocation0]]
  $region54: #{tpu_custom_call.1} parent=0
    _
  %s9 = ssub.s32 1, %s7
  %s10 = scalar_select 0, %s9, %s7
  $region1: #{tpu_custom_call.1} parent=0
    #allocation3 [shape = 'u8[1024]{0}', space=vmem, size = 0x400, scoped, tag = 'input window, operand 0, single buffered']
    #allocation4 [shape = 's32[1]{0}', space=sflag, size = 0x4, scoped, tag = 'scoped memory for tpu_custom_call.1']
    #allocation5 [shape = 's32[1]{0}', space=sflag, size = 0x4, scoped, tag = 'scoped memory for tpu_custom_call.1']
    #allocation6 [shape = 'u8[4096]{0}', space=vmem, size = 0x1000, scoped, tag = 'input window, operand 1, single buffered']
    #allocation7 [shape = 's32[1]{0}', space=sflag, size = 0x4, scoped, tag = 'scoped memory for tpu_custom_call.1']
    #allocation8 [shape = 'u8[16384]{0}', space=vmem, size = 0x4000, scoped, tag = 'input window, operand 2, single buffered']
    #allocation9 [shape = 'u8[524288]{0}', space=vmem, size = 0x80000, scoped, tag = 'input window, operand 3, single buffered']
    #allocation10 [shape = 's32[1]{0}', space=sflag, size = 0x4, scoped, tag = 'scoped memory for tpu_custom_call.1']
    #allocation11 [shape = 'u8[147456]{0}', space=vmem, size = 0x24000, scoped, tag = 'input window, operand 4, single buffered']
    #allocation12 [shape = 'u8[1024]{0}', space=vmem, size = 0x400, scoped, tag = 'output window, operand 0, single buffered']
    %11 = vsyncpa [#allocation4], 0
    %12 = vsyncpa [#allocation7], 0
    %13 = vsyncpa [#allocation10], 0
    %14 = vsyncpa [#allocation5], 0
    // Predicated region
    $region2: #{tpu_custom_call.1} parent=1 // pred_check
      _
    $region3: #{tpu_custom_call.1} parent=1 // pred_check_branch
      %16 = sbr.rel (0) target = $region5
    $region4: #{tpu_custom_call.1} parent=1 // pred_region
      %s18 = ssub.s32 32, 32
      %19 = vsyncadd [#allocation4], %s18
      %s21 = sshll.u32 [#allocation3], 4
      %s22 = int_to_ptr.vmem [resolvable:$true] %s21
      %24 = dma.hbm_to_vmem [thread:$0]  %s0, 32, %s22, [#allocation4]
    $region5: #{tpu_custom_call.1} parent=1 // pred_fallthru
      _
    // Predicated region
    $region6: #{tpu_custom_call.1} parent=1 // pred_check
      _
    $region7: #{tpu_custom_call.1} parent=1 // pred_check_branch
      %26 = sbr.rel (0) target = $region9
    $region8: #{tpu_custom_call.1} parent=1 // pred_region
      %s28 = ssub.s32 128, 128
      %29 = vsyncadd [#allocation7], %s28
      %s31 = sshll.u32 [#allocation6], 4
      %s32 = int_to_ptr.vmem [resolvable:$true] %s31
      %34 = dma.hbm_to_vmem [thread:$0]  %s1, 128, %s32, [#allocation7]
    $region9: #{tpu_custom_call.1} parent=1 // pred_fallthru
      _
    // Predicated region
    $region10: #{tpu_custom_call.1} parent=1 // pred_check
      _
    $region11: #{tpu_custom_call.1} parent=1 // pred_check_branch
      %36 = sbr.rel (0) target = $region13
    $region12: #{tpu_custom_call.1} parent=1 // pred_region
      %s38 = ssub.s32 512, 512
      %39 = vsyncadd [#allocation7], %s38
      %s40 = sshll.u32 [#allocation8], 4
      %s41 = int_to_ptr.vmem [resolvable:$true] %s40
      %46 = dma.hbm_to_vmem [thread:$0]  %s2, 512, %s41, [#allocation7], 128, 128, 8
    $region13: #{tpu_custom_call.1} parent=1 // pred_fallthru
      _
    // Predicated region
    $region14: #{tpu_custom_call.1} parent=1 // pred_check
      _
    $region15: #{tpu_custom_call.1} parent=1 // pred_check_branch
      %48 = sbr.rel (0) target = $region17
    $region16: #{tpu_custom_call.1} parent=1 // pred_region
      %s50 = ssub.s32 16384, 16384
      %51 = vsyncadd [#allocation10], %s50
      %s52 = sshll.u32 [#allocation9], 4
      %s53 = int_to_ptr.vmem [resolvable:$true] %s52
      %58 = dma.hbm_to_vmem [thread:$0]  %s3, 16384, %s53, [#allocation10], 256, 256, 16
    $region17: #{tpu_custom_call.1} parent=1 // pred_fallthru
      _
    // Predicated region
    $region18: #{tpu_custom_call.1} parent=1 // pred_check
      _
    $region19: #{tpu_custom_call.1} parent=1 // pred_check_branch
      %60 = sbr.rel (0) target = $region21
    $region20: #{tpu_custom_call.1} parent=1 // pred_region
      %s62 = ssub.s32 4608, 4608
      %63 = vsyncadd [#allocation10], %s62
      %s64 = sshll.u32 [#allocation11], 4
      %s65 = int_to_ptr.vmem [resolvable:$true] %s64
      %70 = dma.hbm_to_vmem [thread:$0]  %s4, 4608, %s65, [#allocation10], 128, 128, 8
    $region21: #{tpu_custom_call.1} parent=1 // pred_fallthru
      _
    // Predicated region
    $region22: #{tpu_custom_call.1} parent=1 // pred_check
      _
    $region23: #{tpu_custom_call.1} parent=1 // pred_check_branch
      %72 = sbr.rel (0) target = $region25
    $region24: #{tpu_custom_call.1} parent=1 // pred_region
      _
    $region25: #{tpu_custom_call.1} parent=1 // pred_fallthru
      _
    // Predicated region
    $region26: #{tpu_custom_call.1} parent=1 // pred_check
      _
    $region27: #{tpu_custom_call.1} parent=1 // pred_check_branch
      %74 = sbr.rel (0) target = $region29
    $region28: #{tpu_custom_call.1} parent=1 // pred_region
      %75 = dma.done [#allocation4], 32
    $region29: #{tpu_custom_call.1} parent=1 // pred_fallthru
      _
    // Predicated region
    $region30: #{tpu_custom_call.1} parent=1 // pred_check
      _
    $region31: #{tpu_custom_call.1} parent=1 // pred_check_branch
      %77 = sbr.rel (0) target = $region33
    $region32: #{tpu_custom_call.1} parent=1 // pred_region
      %78 = dma.done [#allocation7], 128
    $region33: #{tpu_custom_call.1} parent=1 // pred_fallthru
      _
    // Predicated region
    $region34: #{tpu_custom_call.1} parent=1 // pred_check
      _
    $region35: #{tpu_custom_call.1} parent=1 // pred_check_branch
      %80 = sbr.rel (0) target = $region37
    $region36: #{tpu_custom_call.1} parent=1 // pred_region
      %81 = dma.done [#allocation7], 512
    $region37: #{tpu_custom_call.1} parent=1 // pred_fallthru
      _
    // Predicated region
    $region38: #{tpu_custom_call.1} parent=1 // pred_check
      _
    $region39: #{tpu_custom_call.1} parent=1 // pred_check_branch
      %83 = sbr.rel (0) target = $region41
    $region40: #{tpu_custom_call.1} parent=1 // pred_region
      %84 = dma.done [#allocation10], 16384
    $region41: #{tpu_custom_call.1} parent=1 // pred_fallthru
      _
    // Predicated region
    $region42: #{tpu_custom_call.1} parent=1 // pred_check
      _
    $region43: #{tpu_custom_call.1} parent=1 // pred_check_branch
      %86 = sbr.rel (0) target = $region45
    $region44: #{tpu_custom_call.1} parent=1 // pred_region
      %87 = dma.done [#allocation10], 4608
    $region45: #{tpu_custom_call.1} parent=1 // pred_fallthru
      _
    %v88 = vld [vmem:[#allocation6] sm:$0xff]
    %v89 = vld [vmem:[#allocation9] sm:$0xff]
    %v90 = vld [vmem:[#allocation9 + $0x8] sm:$0xff]
    %v91 = vld [vmem:[#allocation9 + $0x10] sm:$0xff]
    %v92 = vld [vmem:[#allocation9 + $0x18] sm:$0xff]
    %v93 = vld [vmem:[#allocation9 + $0x20] sm:$0xff]
    %v94 = vld [vmem:[#allocation9 + $0x28] sm:$0xff]
    %v95 = vld [vmem:[#allocation9 + $0x30] sm:$0xff]
    %v96 = vld [vmem:[#allocation9 + $0x38] sm:$0xff]
    %v97 = vld [vmem:[#allocation9 + $0x40] sm:$0xff]
    %v98 = vld [vmem:[#allocation9 + $0x48] sm:$0xff]
    %v99 = vld [vmem:[#allocation9 + $0x50] sm:$0xff]
    %v100 = vld [vmem:[#allocation9 + $0x58] sm:$0xff]
    %v101 = vld [vmem:[#allocation9 + $0x60] sm:$0xff]
    %v102 = vld [vmem:[#allocation9 + $0x68] sm:$0xff]
    %v103 = vld [vmem:[#allocation9 + $0x70] sm:$0xff]
    %v104 = vld [vmem:[#allocation9 + $0x78] sm:$0xff]
    %v105 = vld [vmem:[#allocation9 + $0x80] sm:$0xff]
    %v106 = vld [vmem:[#allocation9 + $0x88] sm:$0xff]
    %v107 = vld [vmem:[#allocation9 + $0x90] sm:$0xff]
    %v108 = vld [vmem:[#allocation9 + $0x98] sm:$0xff]
    %v109 = vld [vmem:[#allocation9 + $0xa0] sm:$0xff]
    %v110 = vld [vmem:[#allocation9 + $0xa8] sm:$0xff]
    %v111 = vld [vmem:[#allocation9 + $0xb0] sm:$0xff]
    %v112 = vld [vmem:[#allocation9 + $0xb8] sm:$0xff]
    %v113 = vld [vmem:[#allocation9 + $0xc0] sm:$0xff]
    %v114 = vld [vmem:[#allocation9 + $0xc8] sm:$0xff]
    %v115 = vld [vmem:[#allocation9 + $0xd0] sm:$0xff]
    %v116 = vld [vmem:[#allocation9 + $0xd8] sm:$0xff]
    %v117 = vld [vmem:[#allocation9 + $0xe0] sm:$0xff]
    %v118 = vld [vmem:[#allocation9 + $0xe8] sm:$0xff]
    %v119 = vld [vmem:[#allocation9 + $0xf0] sm:$0xff]
    %v120 = vld [vmem:[#allocation9 + $0xf8] sm:$0xff]
    %v121 = vld [vmem:[#allocation9 + $0x100] sm:$0xff]
    %v122 = vld [vmem:[#allocation9 + $0x108] sm:$0xff]
    %v123 = vld [vmem:[#allocation9 + $0x110] sm:$0xff]
    %v124 = vld [vmem:[#allocation9 + $0x118] sm:$0xff]
    %v125 = vld [vmem:[#allocation9 + $0x120] sm:$0xff]
    %v126 = vld [vmem:[#allocation9 + $0x128] sm:$0xff]
    %v127 = vld [vmem:[#allocation9 + $0x130] sm:$0xff]
    %v128 = vld [vmem:[#allocation9 + $0x138] sm:$0xff]
    %v129 = vld [vmem:[#allocation9 + $0x140] sm:$0xff]
    %v130 = vld [vmem:[#allocation9 + $0x148] sm:$0xff]
    %v131 = vld [vmem:[#allocation9 + $0x150] sm:$0xff]
    %v132 = vld [vmem:[#allocation9 + $0x158] sm:$0xff]
    %v133 = vld [vmem:[#allocation9 + $0x160] sm:$0xff]
    %v134 = vld [vmem:[#allocation9 + $0x168] sm:$0xff]
    %v135 = vld [vmem:[#allocation9 + $0x170] sm:$0xff]
    %v136 = vld [vmem:[#allocation9 + $0x178] sm:$0xff]
    %v137 = vld [vmem:[#allocation9 + $0x180] sm:$0xff]
    %v138 = vld [vmem:[#allocation9 + $0x188] sm:$0xff]
    %v139 = vld [vmem:[#allocation9 + $0x190] sm:$0xff]
    %v140 = vld [vmem:[#allocation9 + $0x198] sm:$0xff]
    %v141 = vld [vmem:[#allocation9 + $0x1a0] sm:$0xff]
    %v142 = vld [vmem:[#allocation9 + $0x1a8] sm:$0xff]
    %v143 = vld [vmem:[#allocation9 + $0x1b0] sm:$0xff]
    %v144 = vld [vmem:[#allocation9 + $0x1b8] sm:$0xff]
    %v145 = vld [vmem:[#allocation9 + $0x1c0] sm:$0xff]
    %v146 = vld [vmem:[#allocation9 + $0x1c8] sm:$0xff]
    %v147 = vld [vmem:[#allocation9 + $0x1d0] sm:$0xff]
    %v148 = vld [vmem:[#allocation9 + $0x1d8] sm:$0xff]
    %v149 = vld [vmem:[#allocation9 + $0x1e0] sm:$0xff]
    %v150 = vld [vmem:[#allocation9 + $0x1e8] sm:$0xff]
    %v151 = vld [vmem:[#allocation9 + $0x1f0] sm:$0xff]
    %v152 = vld [vmem:[#allocation9 + $0x1f8] sm:$0xff]
    %v153 = vld [vmem:[#allocation9 + $0x200] sm:$0xff]
    %v154 = vld [vmem:[#allocation9 + $0x208] sm:$0xff]
    %v155 = vld [vmem:[#allocation9 + $0x210] sm:$0xff]
    %v156 = vld [vmem:[#allocation9 + $0x218] sm:$0xff]
    %v157 = vld [vmem:[#allocation9 + $0x220] sm:$0xff]
    %v158 = vld [vmem:[#allocation9 + $0x228] sm:$0xff]
    %v159 = vld [vmem:[#allocation9 + $0x230] sm:$0xff]
    %v160 = vld [vmem:[#allocation9 + $0x238] sm:$0xff]
    %v161 = vld [vmem:[#allocation9 + $0x240] sm:$0xff]
    %v162 = vld [vmem:[#allocation9 + $0x248] sm:$0xff]
    %v163 = vld [vmem:[#allocation9 + $0x250] sm:$0xff]
    %v164 = vld [vmem:[#allocation9 + $0x258] sm:$0xff]
    %v165 = vld [vmem:[#allocation9 + $0x260] sm:$0xff]
    %v166 = vld [vmem:[#allocation9 + $0x268] sm:$0xff]
    %v167 = vld [vmem:[#allocation9 + $0x270] sm:$0xff]
    %v168 = vld [vmem:[#allocation9 + $0x278] sm:$0xff]
    %v169 = vld [vmem:[#allocation9 + $0x280] sm:$0xff]
    %v170 = vld [vmem:[#allocation9 + $0x288] sm:$0xff]
    %v171 = vld [vmem:[#allocation9 + $0x290] sm:$0xff]
    %v172 = vld [vmem:[#allocation9 + $0x298] sm:$0xff]
    %v173 = vld [vmem:[#allocation9 + $0x2a0] sm:$0xff]
    %v174 = vld [vmem:[#allocation9 + $0x2a8] sm:$0xff]
    %v175 = vld [vmem:[#allocation9 + $0x2b0] sm:$0xff]
    %v176 = vld [vmem:[#allocation9 + $0x2b8] sm:$0xff]
    %v177 = vld [vmem:[#allocation9 + $0x2c0] sm:$0xff]
    %v178 = vld [vmem:[#allocation9 + $0x2c8] sm:$0xff]
    %v179 = vld [vmem:[#allocation9 + $0x2d0] sm:$0xff]
    %v180 = vld [vmem:[#allocation9 + $0x2d8] sm:$0xff]
    %v181 = vld [vmem:[#allocation9 + $0x2e0] sm:$0xff]
    %v182 = vld [vmem:[#allocation9 + $0x2e8] sm:$0xff]
    %v183 = vld [vmem:[#allocation9 + $0x2f0] sm:$0xff]
    %v184 = vld [vmem:[#allocation9 + $0x2f8] sm:$0xff]
    %v185 = vld [vmem:[#allocation9 + $0x300] sm:$0xff]
    %v186 = vld [vmem:[#allocation9 + $0x308] sm:$0xff]
    %v187 = vld [vmem:[#allocation9 + $0x310] sm:$0xff]
    %v188 = vld [vmem:[#allocation9 + $0x318] sm:$0xff]
    %v189 = vld [vmem:[#allocation9 + $0x320] sm:$0xff]
    %v190 = vld [vmem:[#allocation9 + $0x328] sm:$0xff]
    %v191 = vld [vmem:[#allocation9 + $0x330] sm:$0xff]
    %v192 = vld [vmem:[#allocation9 + $0x338] sm:$0xff]
    %v193 = vld [vmem:[#allocation9 + $0x340] sm:$0xff]
    %v194 = vld [vmem:[#allocation9 + $0x348] sm:$0xff]
    %v195 = vld [vmem:[#allocation9 + $0x350] sm:$0xff]
    %v196 = vld [vmem:[#allocation9 + $0x358] sm:$0xff]
    %v197 = vld [vmem:[#allocation9 + $0x360] sm:$0xff]
    %v198 = vld [vmem:[#allocation9 + $0x368] sm:$0xff]
    %v199 = vld [vmem:[#allocation9 + $0x370] sm:$0xff]
    %v200 = vld [vmem:[#allocation9 + $0x378] sm:$0xff]
    %v201 = vld [vmem:[#allocation9 + $0x380] sm:$0xff]
    %v202 = vld [vmem:[#allocation9 + $0x388] sm:$0xff]
    %v203 = vld [vmem:[#allocation9 + $0x390] sm:$0xff]
    %v204 = vld [vmem:[#allocation9 + $0x398] sm:$0xff]
    %v205 = vld [vmem:[#allocation9 + $0x3a0] sm:$0xff]
    %v206 = vld [vmem:[#allocation9 + $0x3a8] sm:$0xff]
    %v207 = vld [vmem:[#allocation9 + $0x3b0] sm:$0xff]
    %v208 = vld [vmem:[#allocation9 + $0x3b8] sm:$0xff]
    %v209 = vld [vmem:[#allocation9 + $0x3c0] sm:$0xff]
    %v210 = vld [vmem:[#allocation9 + $0x3c8] sm:$0xff]
    %v211 = vld [vmem:[#allocation9 + $0x3d0] sm:$0xff]
    %v212 = vld [vmem:[#allocation9 + $0x3d8] sm:$0xff]
    %v213 = vld [vmem:[#allocation9 + $0x3e0] sm:$0xff]
    %v214 = vld [vmem:[#allocation9 + $0x3e8] sm:$0xff]
    %v215 = vld [vmem:[#allocation9 + $0x3f0] sm:$0xff]
    %v216 = vld [vmem:[#allocation9 + $0x3f8] sm:$0xff]
    %v218 = vcombine.high %v88, %v88
    %v220 = vunpack.c.l.s4 1983009808
    %v221 = vunpack.c.0.s8 %v220
    %v222 = vlaneseq
    %v223 = vshrl.u32 %v222, 7
    %v224 = vsub.s32 %v221, %v223
    %v225 = vrot.slane %v88, %v224
    %v227 = vunpack.c.l.s4 1983009808
    %v228 = vunpack.c.0.s8 %v227
    %v229 = vlaneseq
    %v230 = vshrl.u32 %v229, 7
    %v231 = vsub.s32 %v228, %v230
    %v232 = vrot.slane %v218, %v231
    %v233 = vcombine.high %v225, %v225
    %v234 = vcombine.high %v232, %v232
    %239 = vmatprep.subr.mxu0 %v90
    %240 = vmatpush1.msra.mxu0 %v89
    %241 = vmatprep.subr.mxu0 %v92
    %242 = vmatpush1.msra.mxu0 %v91
    %243 = vmatprep.subr.mxu0 %v94
    %244 = vmatpush1.msra.mxu0 %v93
    %245 = vmatprep.subr.mxu0 %v96
    %246 = vmatpush1.msra.mxu0 %v95
    %247 = vmatprep.subr.mxu0 %v98
    %248 = vmatpush1.msra.mxu0 %v97
    %249 = vmatprep.subr.mxu0 %v100
    %250 = vmatpush1.msra.mxu0 %v99
    %251 = vmatprep.subr.mxu0 %v102
    %252 = vmatpush1.msra.mxu0 %v101
    %253 = vmatprep.subr.mxu0 %v104
    %254 = vmatpush1.msra.mxu0 %v103
    %255 = vmatprep.subr.mxu0 %v106
    %256 = vmatpush1.msra.mxu0 %v105
    %257 = vmatprep.subr.mxu0 %v108
    %258 = vmatpush1.msra.mxu0 %v107
    %259 = vmatprep.subr.mxu0 %v110
    %260 = vmatpush1.msra.mxu0 %v109
    %261 = vmatprep.subr.mxu0 %v112
    %262 = vmatpush1.msra.mxu0 %v111
    %263 = vmatprep.subr.mxu0 %v114
    %264 = vmatpush1.msra.mxu0 %v113
    %265 = vmatprep.subr.mxu0 %v116
    %266 = vmatpush1.msra.mxu0 %v115
    %267 = vmatprep.subr.mxu0 %v118
    %268 = vmatpush1.msra.mxu0 %v117
    %269 = vmatprep.subr.mxu0 %v120
    %270 = vmatpush1.msra.mxu0 %v119
    %271 = vmatprep.subr.mxu0 %v122
    %272 = vmatpush1.msra.mxu0 %v121
    %273 = vmatprep.subr.mxu0 %v124
    %274 = vmatpush1.msra.mxu0 %v123
    %275 = vmatprep.subr.mxu0 %v126
    %276 = vmatpush1.msra.mxu0 %v125
    %277 = vmatprep.subr.mxu0 %v128
    %278 = vmatpush1.msra.mxu0 %v127
    %279 = vmatprep.subr.mxu0 %v130
    %280 = vmatpush1.msra.mxu0 %v129
    %281 = vmatprep.subr.mxu0 %v132
    %282 = vmatpush1.msra.mxu0 %v131
    %283 = vmatprep.subr.mxu0 %v134
    %284 = vmatpush1.msra.mxu0 %v133
    %285 = vmatprep.subr.mxu0 %v136
    %286 = vmatpush1.msra.mxu0 %v135
    %287 = vmatprep.subr.mxu0 %v138
    %288 = vmatpush1.msra.mxu0 %v137
    %289 = vmatprep.subr.mxu0 %v140
    %290 = vmatpush1.msra.mxu0 %v139
    %291 = vmatprep.subr.mxu0 %v142
    %292 = vmatpush1.msra.mxu0 %v141
    %293 = vmatprep.subr.mxu0 %v144
    %294 = vmatpush1.msra.mxu0 %v143
    %295 = vmatprep.subr.mxu0 %v146
    %296 = vmatpush1.msra.mxu0 %v145
    %297 = vmatprep.subr.mxu0 %v148
    %298 = vmatpush1.msra.mxu0 %v147
    %299 = vmatprep.subr.mxu0 %v150
    %300 = vmatpush1.msra.mxu0 %v149
    %301 = vmatprep.subr.mxu0 %v152
    %302 = vmatpush1.msra.mxu0 %v151
    %303 = vmatprep.mubr.f32.mxu0 %v233
    %304 = vmatmul.mubr.f32.gmra.mrb[0].mxu0 %v225
    %v305 = vpop.f32.mrb[0].mxu0
    %v306 = vadd.f32 0.0, %v305
    %v307 = vpop.f32.mrb[0].mxu0
    %v308 = vadd.f32 0.0, %v307
    %309 = vdwg.mxu0
    %310 = vmatprep.subr.mxu0 %v154
    %311 = vmatpush1.msra.mxu0 %v153
    %312 = vmatprep.subr.mxu0 %v156
    %313 = vmatpush1.msra.mxu0 %v155
    %314 = vmatprep.subr.mxu0 %v158
    %315 = vmatpush1.msra.mxu0 %v157
    %316 = vmatprep.subr.mxu0 %v160
    %317 = vmatpush1.msra.mxu0 %v159
    %318 = vmatprep.subr.mxu0 %v162
    %319 = vmatpush1.msra.mxu0 %v161
    %320 = vmatprep.subr.mxu0 %v164
    %321 = vmatpush1.msra.mxu0 %v163
    %322 = vmatprep.subr.mxu0 %v166
    %323 = vmatpush1.msra.mxu0 %v165
    %324 = vmatprep.subr.mxu0 %v168
    %325 = vmatpush1.msra.mxu0 %v167
    %326 = vmatprep.subr.mxu0 %v170
    %327 = vmatpush1.msra.mxu0 %v169
    %328 = vmatprep.subr.mxu0 %v172
    %329 = vmatpush1.msra.mxu0 %v171
    %330 = vmatprep.subr.mxu0 %v174
    %331 = vmatpush1.msra.mxu0 %v173
    %332 = vmatprep.subr.mxu0 %v176
    %333 = vmatpush1.msra.mxu0 %v175
    %334 = vmatprep.subr.mxu0 %v178
    %335 = vmatpush1.msra.mxu0 %v177
    %336 = vmatprep.subr.mxu0 %v180
    %337 = vmatpush1.msra.mxu0 %v179
    %338 = vmatprep.subr.mxu0 %v182
    %339 = vmatpush1.msra.mxu0 %v181
    %340 = vmatprep.subr.mxu0 %v184
    %341 = vmatpush1.msra.mxu0 %v183
    %342 = vmatprep.subr.mxu0 %v186
    %343 = vmatpush1.msra.mxu0 %v185
    %344 = vmatprep.subr.mxu0 %v188
    %345 = vmatpush1.msra.mxu0 %v187
    %346 = vmatprep.subr.mxu0 %v190
    %347 = vmatpush1.msra.mxu0 %v189
    %348 = vmatprep.subr.mxu0 %v192
    %349 = vmatpush1.msra.mxu0 %v191
    %350 = vmatprep.subr.mxu0 %v194
    %351 = vmatpush1.msra.mxu0 %v193
    %352 = vmatprep.subr.mxu0 %v196
    %353 = vmatpush1.msra.mxu0 %v195
    %354 = vmatprep.subr.mxu0 %v198
    %355 = vmatpush1.msra.mxu0 %v197
    %356 = vmatprep.subr.mxu0 %v200
    %357 = vmatpush1.msra.mxu0 %v199
    %358 = vmatprep.subr.mxu0 %v202
    %359 = vmatpush1.msra.mxu0 %v201
    %360 = vmatprep.subr.mxu0 %v204
    %361 = vmatpush1.msra.mxu0 %v203
    %362 = vmatprep.subr.mxu0 %v206
    %363 = vmatpush1.msra.mxu0 %v205
    %364 = vmatprep.subr.mxu0 %v208
    %365 = vmatpush1.msra.mxu0 %v207
    %366 = vmatprep.subr.mxu0 %v210
    %367 = vmatpush1.msra.mxu0 %v209
    %368 = vmatprep.subr.mxu0 %v212
    %369 = vmatpush1.msra.mxu0 %v211
    %370 = vmatprep.subr.mxu0 %v214
    %371 = vmatpush1.msra.mxu0 %v213
    %372 = vmatprep.subr.mxu0 %v216
    %373 = vmatpush1.msra.mxu0 %v215
    %374 = vmatprep.mubr.f32.mxu0 %v234
    %375 = vmatmul.mubr.f32.gmra.mrb[0].mxu0 %v232
    %v376 = vpop.f32.mrb[0].mxu0
    %v377 = vadd.f32 %v306, %v376
    %v378 = vpop.f32.mrb[0].mxu0
    %v379 = vadd.f32 %v308, %v378
    %380 = vdwg.mxu0
    %v381 = vmax.f32 %v377, 0.0
    %v382 = vmax.f32 %v379, 0.0
    %v385 = vcombine.low %v381, %v382
    %v387 = vunpack.c.l.s4 1983009808
    %v388 = vunpack.c.0.s8 %v387
    %v389 = vlaneseq
    %v390 = vshrl.u32 %v389, 7
    %v391 = vsub.s32 %v388, %v390
    %v392 = vrot.slane %v385, %v391
    %394 = vst [vmem:[#allocation2] sm:$0xf] %v392
    %v395 = vld [vmem:[#allocation3] sm:$0x3]
    %v396 = vld [vmem:[#allocation8] sm:$0xff]
    %v397 = vld [vmem:[#allocation8 + $0x8] sm:$0xff]
    %v398 = vld [vmem:[#allocation8 + $0x10] sm:$0xff]
    %v399 = vld [vmem:[#allocation8 + $0x18] sm:$0xff]
    %vm400 = vcmask 261120
    %v402 = vsel %vm400, %v395, 0
    %404 = vmatprep.subr.mxu0 0.0
    %405 = vmatpush1.msra.mxu0 %v396
    %406 = vmatprep.subr.mxu0 0.0
    %407 = vmatpush1.msra.mxu0 %v397
    %408 = vmatprep.subr.mxu0 0.0
    %409 = vmatpush1.msra.mxu0 %v398
    %410 = vmatprep.subr.mxu0 0.0
    %411 = vmatpush1.msra.mxu0 %v399
    %412 = vmatprep.subr.mxu0 0.0
    %413 = vmatpush1.msra.mxu0 0.0
    %414 = vmatprep.subr.mxu0 0.0
    %415 = vmatpush1.msra.mxu0 0.0
    %416 = vmatprep.subr.mxu0 0.0
    %417 = vmatpush1.msra.mxu0 0.0
    %418 = vmatprep.subr.mxu0 0.0
    %419 = vmatpush1.msra.mxu0 0.0
    %420 = vmatprep.subr.mxu0 0.0
    %421 = vmatpush1.msra.mxu0 0.0
    %422 = vmatprep.subr.mxu0 0.0
    %423 = vmatpush1.msra.mxu0 0.0
    %424 = vmatprep.subr.mxu0 0.0
    %425 = vmatpush1.msra.mxu0 0.0
    %426 = vmatprep.subr.mxu0 0.0
    %427 = vmatpush1.msra.mxu0 0.0
    %428 = vmatprep.subr.mxu0 0.0
    %429 = vmatpush1.msra.mxu0 0.0
    %430 = vmatprep.subr.mxu0 0.0
    %431 = vmatpush1.msra.mxu0 0.0
    %432 = vmatprep.subr.mxu0 0.0
    %433 = vmatpush1.msra.mxu0 0.0
    %434 = vmatprep.subr.mxu0 0.0
    %435 = vmatpush1.msra.mxu0 0.0
    %436 = vmatprep.subr.mxu0 0.0
    %437 = vmatpush1.msra.mxu0 0.0
    %438 = vmatprep.subr.mxu0 0.0
    %439 = vmatpush1.msra.mxu0 0.0
    %440 = vmatprep.subr.mxu0 0.0
    %441 = vmatpush1.msra.mxu0 0.0
    %442 = vmatprep.subr.mxu0 0.0
    %443 = vmatpush1.msra.mxu0 0.0
    %444 = vmatprep.subr.mxu0 0.0
    %445 = vmatpush1.msra.mxu0 0.0
    %446 = vmatprep.subr.mxu0 0.0
    %447 = vmatpush1.msra.mxu0 0.0
    %448 = vmatprep.subr.mxu0 0.0
    %449 = vmatpush1.msra.mxu0 0.0
    %450 = vmatprep.subr.mxu0 0.0
    %451 = vmatpush1.msra.mxu0 0.0
    %452 = vmatprep.subr.mxu0 0.0
    %453 = vmatpush1.msra.mxu0 0.0
    %454 = vmatprep.subr.mxu0 0.0
    %455 = vmatpush1.msra.mxu0 0.0
    %456 = vmatprep.subr.mxu0 0.0
    %457 = vmatpush1.msra.mxu0 0.0
    %458 = vmatprep.subr.mxu0 0.0
    %459 = vmatpush1.msra.mxu0 0.0
    %460 = vmatprep.subr.mxu0 0.0
    %461 = vmatpush1.msra.mxu0 0.0
    %462 = vmatprep.subr.mxu0 0.0
    %463 = vmatpush1.msra.mxu0 0.0
    %464 = vmatprep.subr.mxu0 0.0
    %465 = vmatpush1.msra.mxu0 0.0
    %466 = vmatprep.subr.mxu0 0.0
    %467 = vmatpush1.msra.mxu0 0.0
    %468 = vmatprep.mubr.f32.mxu0 0.0
    %469 = vmatmul.mubr.f32.gmra.mrb[0].mxu0 %v402
    %v470 = vpop.f32.mrb[0].mxu0
    %v471 = vadd.f32 0.0, %v470
    %v472 = vpop.f32.mrb[0].mxu0
    %473 = vdwg.mxu0
    %v474 = vmax.f32 %v471, 0.0
    %vm475 = vcmask 254976
    %476 = vst.msk [vmem:[#allocation2 + $0x4] sm:$0x3] %vm475, %v474
    %v477 = vld [vmem:[#allocation2] sm:$0x3f]
    %v478 = vld [vmem:[#allocation11] sm:$0xff]
    %v479 = vld [vmem:[#allocation11 + $0x8] sm:$0xff]
    %v480 = vld [vmem:[#allocation11 + $0x10] sm:$0xff]
    %v481 = vld [vmem:[#allocation11 + $0x18] sm:$0xff]
    %v482 = vld [vmem:[#allocation11 + $0x20] sm:$0xff]
    %v483 = vld [vmem:[#allocation11 + $0x28] sm:$0xff]
    %v484 = vld [vmem:[#allocation11 + $0x30] sm:$0xff]
    %v485 = vld [vmem:[#allocation11 + $0x38] sm:$0xff]
    %v486 = vld [vmem:[#allocation11 + $0x40] sm:$0xff]
    %v487 = vld [vmem:[#allocation11 + $0x48] sm:$0xff]
    %v488 = vld [vmem:[#allocation11 + $0x50] sm:$0xff]
    %v489 = vld [vmem:[#allocation11 + $0x58] sm:$0xff]
    %v490 = vld [vmem:[#allocation11 + $0x60] sm:$0xff]
    %v491 = vld [vmem:[#allocation11 + $0x68] sm:$0xff]
    %v492 = vld [vmem:[#allocation11 + $0x70] sm:$0xff]
    %v493 = vld [vmem:[#allocation11 + $0x78] sm:$0xff]
    %v494 = vld [vmem:[#allocation11 + $0x80] sm:$0xff]
    %v495 = vld [vmem:[#allocation11 + $0x88] sm:$0xff]
    %v496 = vld [vmem:[#allocation11 + $0x90] sm:$0xff]
    %v497 = vld [vmem:[#allocation11 + $0x98] sm:$0xff]
    %v498 = vld [vmem:[#allocation11 + $0xa0] sm:$0xff]
    %v499 = vld [vmem:[#allocation11 + $0xa8] sm:$0xff]
    %v500 = vld [vmem:[#allocation11 + $0xb0] sm:$0xff]
    %v501 = vld [vmem:[#allocation11 + $0xb8] sm:$0xff]
    %v502 = vld [vmem:[#allocation11 + $0xc0] sm:$0xff]
    %v503 = vld [vmem:[#allocation11 + $0xc8] sm:$0xff]
    %v504 = vld [vmem:[#allocation11 + $0xd0] sm:$0xff]
    %v505 = vld [vmem:[#allocation11 + $0xd8] sm:$0xff]
    %v506 = vld [vmem:[#allocation11 + $0xe0] sm:$0xff]
    %v507 = vld [vmem:[#allocation11 + $0xe8] sm:$0xff]
    %v508 = vld [vmem:[#allocation11 + $0xf0] sm:$0xff]
    %v509 = vld [vmem:[#allocation11 + $0xf8] sm:$0xff]
    %v510 = vld [vmem:[#allocation11 + $0x100] sm:$0xff]
    %v511 = vld [vmem:[#allocation11 + $0x108] sm:$0xff]
    %v512 = vld [vmem:[#allocation11 + $0x110] sm:$0xff]
    %v513 = vld [vmem:[#allocation11 + $0x118] sm:$0xff]
    %v514 = vld [vmem:[%s5] sm:$0x1]
    %v516 = vlaneseq
    %v517 = vshrl.u32 %v516, 7
    %v518 = vsub.s32 0, %v517
    %v519 = vrot.slane %v514, %v518
    %v522 = vcombine.high %v477, %v477
    %v524 = vunpack.c.l.s4 1983009808
    %v525 = vunpack.c.0.s8 %v524
    %v526 = vlaneseq
    %v527 = vshrl.u32 %v526, 7
    %v528 = vsub.s32 %v525, %v527
    %v529 = vrot.slane %v477, %v528
    %v531 = vunpack.c.l.s4 1983009808
    %v532 = vunpack.c.0.s8 %v531
    %v533 = vlaneseq
    %v534 = vshrl.u32 %v533, 7
    %v535 = vsub.s32 %v532, %v534
    %v536 = vrot.slane %v522, %v535
    %v537 = vcombine.high %v529, %v529
    %v540 = vsel %vm400, %v536, 0
    %542 = vmatprep.subr.mxu0 0.0
    %543 = vmatpush1.msra.mxu0 %v478
    %544 = vmatprep.subr.mxu0 0.0
    %545 = vmatpush1.msra.mxu0 %v479
    %546 = vmatprep.subr.mxu0 0.0
    %547 = vmatpush1.msra.mxu0 %v480
    %548 = vmatprep.subr.mxu0 0.0
    %549 = vmatpush1.msra.mxu0 %v481
    %550 = vmatprep.subr.mxu0 0.0
    %551 = vmatpush1.msra.mxu0 %v482
    %552 = vmatprep.subr.mxu0 0.0
    %553 = vmatpush1.msra.mxu0 %v483
    %554 = vmatprep.subr.mxu0 0.0
    %555 = vmatpush1.msra.mxu0 %v484
    %556 = vmatprep.subr.mxu0 0.0
    %557 = vmatpush1.msra.mxu0 %v485
    %558 = vmatprep.subr.mxu0 0.0
    %559 = vmatpush1.msra.mxu0 %v486
    %560 = vmatprep.subr.mxu0 0.0
    %561 = vmatpush1.msra.mxu0 %v487
    %562 = vmatprep.subr.mxu0 0.0
    %563 = vmatpush1.msra.mxu0 %v488
    %564 = vmatprep.subr.mxu0 0.0
    %565 = vmatpush1.msra.mxu0 %v489
    %566 = vmatprep.subr.mxu0 0.0
    %567 = vmatpush1.msra.mxu0 %v490
    %568 = vmatprep.subr.mxu0 0.0
    %569 = vmatpush1.msra.mxu0 %v491
    %570 = vmatprep.subr.mxu0 0.0
    %571 = vmatpush1.msra.mxu0 %v492
    %572 = vmatprep.subr.mxu0 0.0
    %573 = vmatpush1.msra.mxu0 %v493
    %574 = vmatprep.subr.mxu0 0.0
    %575 = vmatpush1.msra.mxu0 %v494
    %576 = vmatprep.subr.mxu0 0.0
    %577 = vmatpush1.msra.mxu0 %v495
    %578 = vmatprep.subr.mxu0 0.0
    %579 = vmatpush1.msra.mxu0 %v496
    %580 = vmatprep.subr.mxu0 0.0
    %581 = vmatpush1.msra.mxu0 %v497
    %582 = vmatprep.subr.mxu0 0.0
    %583 = vmatpush1.msra.mxu0 %v498
    %584 = vmatprep.subr.mxu0 0.0
    %585 = vmatpush1.msra.mxu0 %v499
    %586 = vmatprep.subr.mxu0 0.0
    %587 = vmatpush1.msra.mxu0 %v500
    %588 = vmatprep.subr.mxu0 0.0
    %589 = vmatpush1.msra.mxu0 %v501
    %590 = vmatprep.subr.mxu0 0.0
    %591 = vmatpush1.msra.mxu0 %v502
    %592 = vmatprep.subr.mxu0 0.0
    %593 = vmatpush1.msra.mxu0 %v503
    %594 = vmatprep.subr.mxu0 0.0
    %595 = vmatpush1.msra.mxu0 %v504
    %596 = vmatprep.subr.mxu0 0.0
    %597 = vmatpush1.msra.mxu0 %v505
    %598 = vmatprep.subr.mxu0 0.0
    %599 = vmatpush1.msra.mxu0 %v506
    %600 = vmatprep.subr.mxu0 0.0
    %601 = vmatpush1.msra.mxu0 %v507
    %602 = vmatprep.subr.mxu0 0.0
    %603 = vmatpush1.msra.mxu0 %v508
    %604 = vmatprep.subr.mxu0 0.0
    %605 = vmatpush1.msra.mxu0 %v509
    %606 = vmatprep.mubr.f32.mxu0 %v537
    %607 = vmatmul.mubr.f32.gmra.mrb[0].mxu0 %v529
    %v608 = vpop.f32.mrb[0].mxu0
    %v609 = vadd.f32 %v519, %v608
    %v610 = vpop.f32.mrb[0].mxu0
    %611 = vdwg.mxu0
    %612 = vmatprep.subr.mxu0 0.0
    %613 = vmatpush1.msra.mxu0 %v510
    %614 = vmatprep.subr.mxu0 0.0
    %615 = vmatpush1.msra.mxu0 %v511
    %616 = vmatprep.subr.mxu0 0.0
    %617 = vmatpush1.msra.mxu0 %v512
    %618 = vmatprep.subr.mxu0 0.0
    %619 = vmatpush1.msra.mxu0 %v513
    %620 = vmatprep.subr.mxu0 0.0
    %621 = vmatpush1.msra.mxu0 0.0
    %622 = vmatprep.subr.mxu0 0.0
    %623 = vmatpush1.msra.mxu0 0.0
    %624 = vmatprep.subr.mxu0 0.0
    %625 = vmatpush1.msra.mxu0 0.0
    %626 = vmatprep.subr.mxu0 0.0
    %627 = vmatpush1.msra.mxu0 0.0
    %628 = vmatprep.subr.mxu0 0.0
    %629 = vmatpush1.msra.mxu0 0.0
    %630 = vmatprep.subr.mxu0 0.0
    %631 = vmatpush1.msra.mxu0 0.0
    %632 = vmatprep.subr.mxu0 0.0
    %633 = vmatpush1.msra.mxu0 0.0
    %634 = vmatprep.subr.mxu0 0.0
    %635 = vmatpush1.msra.mxu0 0.0
    %636 = vmatprep.subr.mxu0 0.0
    %637 = vmatpush1.msra.mxu0 0.0
    %638 = vmatprep.subr.mxu0 0.0
    %639 = vmatpush1.msra.mxu0 0.0
    %640 = vmatprep.subr.mxu0 0.0
    %641 = vmatpush1.msra.mxu0 0.0
    %642 = vmatprep.subr.mxu0 0.0
    %643 = vmatpush1.msra.mxu0 0.0
    %644 = vmatprep.subr.mxu0 0.0
    %645 = vmatpush1.msra.mxu0 0.0
    %646 = vmatprep.subr.mxu0 0.0
    %647 = vmatpush1.msra.mxu0 0.0
    %648 = vmatprep.subr.mxu0 0.0
    %649 = vmatpush1.msra.mxu0 0.0
    %650 = vmatprep.subr.mxu0 0.0
    %651 = vmatpush1.msra.mxu0 0.0
    %652 = vmatprep.subr.mxu0 0.0
    %653 = vmatpush1.msra.mxu0 0.0
    %654 = vmatprep.subr.mxu0 0.0
    %655 = vmatpush1.msra.mxu0 0.0
    %656 = vmatprep.subr.mxu0 0.0
    %657 = vmatpush1.msra.mxu0 0.0
    %658 = vmatprep.subr.mxu0 0.0
    %659 = vmatpush1.msra.mxu0 0.0
    %660 = vmatprep.subr.mxu0 0.0
    %661 = vmatpush1.msra.mxu0 0.0
    %662 = vmatprep.subr.mxu0 0.0
    %663 = vmatpush1.msra.mxu0 0.0
    %664 = vmatprep.subr.mxu0 0.0
    %665 = vmatpush1.msra.mxu0 0.0
    %666 = vmatprep.subr.mxu0 0.0
    %667 = vmatpush1.msra.mxu0 0.0
    %668 = vmatprep.subr.mxu0 0.0
    %669 = vmatpush1.msra.mxu0 0.0
    %670 = vmatprep.subr.mxu0 0.0
    %671 = vmatpush1.msra.mxu0 0.0
    %672 = vmatprep.subr.mxu0 0.0
    %673 = vmatpush1.msra.mxu0 0.0
    %674 = vmatprep.subr.mxu0 0.0
    %675 = vmatpush1.msra.mxu0 0.0
    %676 = vmatprep.mubr.f32.mxu0 0.0
    %677 = vmatmul.mubr.f32.gmra.mrb[0].mxu0 %v540
    %v678 = vpop.f32.mrb[0].mxu0
    %v679 = vadd.f32 %v609, %v678
    %v680 = vpop.f32.mrb[0].mxu0
    %681 = vdwg.mxu0
    %682 = vst [vmem:[#allocation12] sm:$0x3] %v679
    // Predicated region
    $region46: #{tpu_custom_call.1} parent=1 // pred_check
      _
    $region47: #{tpu_custom_call.1} parent=1 // pred_check_branch
      %684 = sbr.rel (0) target = $region49
    $region48: #{tpu_custom_call.1} parent=1 // pred_region
      %s686 = ssub.s32 32, 32
      %687 = vsyncadd [#allocation5], %s686
      %s689 = sshll.u32 [#allocation12], 4
      %s690 = int_to_ptr.vmem [resolvable:$true] %s689
      %692 = dma.vmem_to_hbm [thread:$0]  %s690, 32, %s6, [#allocation5]
    $region49: #{tpu_custom_call.1} parent=1 // pred_fallthru
      _
    // Predicated region
    $region50: #{tpu_custom_call.1} parent=1 // pred_check
      _
    $region51: #{tpu_custom_call.1} parent=1 // pred_check_branch
      %694 = sbr.rel (0) target = $region53
    $region52: #{tpu_custom_call.1} parent=1 // pred_region
      %695 = dma.done [#allocation5], 32
    $region53: #{tpu_custom_call.1} parent=1 // pred_fallthru
      _
    %696 = vsyncpa [#allocation4], 1
    %697 = vsyncpa [#allocation7], 1
    %698 = vsyncpa [#allocation10], 1
    %699 = vsyncpa [#allocation5], 1

</llo_original>
